<compile_context>
chip_gen: v7x
topology: tpu7x:2x2x1
jax: 0.10.0
libtpu: 0.0.40
codegen_flags: <defaults>
</compile_context>

<pallas_src>
import functools

import jax
import jax.numpy as jnp
from jax.experimental import pallas as pl
from jax.experimental.pallas import tpu as pltpu


def _round_up(x, m):
    return ((x + m - 1) // m) * m


def _patch_embed_kernel(x_ref, w_ref, b_ref, o_ref):
    # x_ref: (tm, K) patch rows; w_ref: (K, tn); b_ref: (1, tn) f32.
    acc = jnp.dot(x_ref[...], w_ref[...], preferred_element_type=jnp.float32)
    o_ref[...] = (acc + b_ref[...]).astype(o_ref.dtype)


def _vmem_limit_bytes():
    # Generation-aware VMEM budget: ~75% of physical, clamped to [32, 96] MiB
    # (=> ~48 MiB on v7x's 64 MiB VMEM, 96 MiB on v5e/v6e's 128 MiB).
    try:
        cap = pltpu.get_tpu_info().vmem_capacity_bytes
    except Exception:  # CPU lowering / unknown chip: assume v7x-sized VMEM.
        cap = 64 * 1024 * 1024
    return max(32 * 1024 * 1024, min(int(cap) * 3 // 4, 96 * 1024 * 1024))


def patch_embed_matmul(x_patches, weight, bias, *, tm=512, tn=512,
                       out_dtype=jnp.float32):
    """(M, K) @ (K, E) + (E,) -> (M, E), row/column-tiled GEMM on the MXU."""
    M, K = x_patches.shape
    E = weight.shape[1]
    x_bytes = jnp.dtype(x_patches.dtype).itemsize
    w_bytes = jnp.dtype(weight.dtype).itemsize
    o_bytes = jnp.dtype(out_dtype).itemsize
    sub = 16 if x_bytes == 2 else 8          # bf16 packs 16 rows per sublane

    # ---- column (embed-dim) tiling: lane-dense output, bounded weight tile --
    E_pad = _round_up(E, 128)
    if K * E_pad * w_bytes > 4 * 1024 * 1024 and E_pad > tn:
        tn_eff = _round_up(tn, 128)
        E_pad = _round_up(E_pad, tn_eff)
    else:
        tn_eff = E_pad
    if E_pad != E:
        weight = jnp.pad(weight, ((0, 0), (0, E_pad - E)))
        bias = jnp.pad(bias, (0, E_pad - E))
    bias2d = bias.reshape(1, E_pad).astype(jnp.float32)
    grid_n = E_pad // tn_eff

    # ---- row tiling ----------------------------------------------------------
    tm_eff = max(sub, min(_round_up(tm, sub), _round_up(M, sub)))
    # Megacore (v7x): make sure the parallel grid has >= 2 steps so the second
    # TensorCore gets work; no effect on v5e/v6e.
    if grid_n * (_round_up(M, tm_eff) // tm_eff) < 2 and tm_eff >= 2 * sub:
        tm_eff = _round_up((tm_eff + 1) // 2, sub)

    vmem_limit = _vmem_limit_bytes()
    w_bufs = 1 if grid_n == 1 else 2

    def _tile_bytes(t):
        return (2 * t * K * x_bytes                 # double-buffered patch rows
                + w_bufs * K * tn_eff * w_bytes     # weight tile
                + w_bufs * tn_eff * 4               # bias tile
                + 2 * t * tn_eff * o_bytes)         # double-buffered output

    while tm_eff > sub and _tile_bytes(tm_eff) > vmem_limit:
        tm_eff = _round_up(tm_eff // 2, sub)

    M_pad = _round_up(M, tm_eff)
    if M_pad != M:
        x_patches = jnp.pad(x_patches, ((0, M_pad - M), (0, 0)))
    grid_m = M_pad // tm_eff

    # Weight/bias index maps are constant along the (inner) row axis; when the
    # grid has a single column step they are constant over the whole grid, so
    # single-buffer them (fetched once, half the VMEM footprint).
    wb_pipe = pl.Buffered(1) if grid_n == 1 else None

    cost = pl.CostEstimate(
        flops=2 * M_pad * K * E_pad,
        transcendentals=0,
        bytes_accessed=(M_pad * K * x_bytes + K * E_pad * w_bytes
                        + E_pad * 4 + M_pad * E_pad * o_bytes))

    out = pl.pallas_call(
        _patch_embed_kernel,
        out_shape=jax.ShapeDtypeStruct((M_pad, E_pad), out_dtype),
        grid_spec=pltpu.PrefetchScalarGridSpec(
            num_scalar_prefetch=0,
            # Column axis outer -> each weight tile is reused across all rows.
            grid=(grid_n, grid_m),
            in_specs=[
                pl.BlockSpec((tm_eff, K), lambda j, i: (i, 0)),
                pl.BlockSpec((K, tn_eff), lambda j, i: (0, j),
                             pipeline_mode=wb_pipe),
                pl.BlockSpec((1, tn_eff), lambda j, i: (0, j),
                             pipeline_mode=wb_pipe),
            ],
            out_specs=pl.BlockSpec((tm_eff, tn_eff), lambda j, i: (i, j)),
        ),
        compiler_params=pltpu.CompilerParams(
            dimension_semantics=("parallel", "parallel"),
            vmem_limit_bytes=vmem_limit,
        ),
        cost_estimate=cost,
    )(x_patches, weight, bias2d)

    return out[:M, :E]


def patch_embed_3d(x, conv_weight, conv_bias, patch_size, *, tm=512, tn=512,
                   compute_dtype=None, out_dtype=None):
    """Forward of PatchEmbed3D.

    x:           (B, C, D, H, W)     NCDHW like PyTorch
    conv_weight: (E, C, pd, ph, pw)  PyTorch Conv3d weight layout
    conv_bias:   (E,)
    returns:     (B, N_patches, E)
    """
    B, C, D, H, W = x.shape
    pd, ph, pw = patch_size
    E = conv_weight.shape[0]
    nd, nh, nw = D // pd, H // ph, W // pw
    n_patches = nd * nh * nw
    K = C * pd * ph * pw

    if compute_dtype is not None:
        x = x.astype(compute_dtype)              # cast first: transpose moves fewer bytes
        conv_weight = conv_weight.astype(compute_dtype)
    if out_dtype is None:
        out_dtype = compute_dtype if compute_dtype is not None else jnp.float32

    # TODO(synk): this reshape+transpose patch extraction is an XLA-side HBM
    # round trip of x; an in-kernel DMA gather is descriptor-bound for tiny C,
    # so it stays in XLA (overlapped with the kernel via cost_estimate).
    xp = x.reshape(B, C, nd, pd, nh, ph, nw, pw)
    xp = xp.transpose(0, 2, 4, 6, 1, 3, 5, 7)    # (B, nd, nh, nw, C, pd, ph, pw)
    xp = xp.reshape(B * n_patches, K)

    w2d = conv_weight.reshape(E, K).T            # (K, E), matching column order

    out = patch_embed_matmul(xp, w2d, conv_bias, tm=tm, tn=tn,
                             out_dtype=out_dtype)
    return out.reshape(B, n_patches, E)


def _reference(x, conv_weight, conv_bias, patch_size):
    B, C, D, H, W = x.shape
    pd, ph, pw = patch_size
    E = conv_weight.shape[0]
    nd, nh, nw = D // pd, H // ph, W // pw
    n = nd * nh * nw
    xp = x.reshape(B, C, nd, pd, nh, ph, nw, pw)
    xp = xp.transpose(0, 2, 4, 6, 1, 3, 5, 7).reshape(B, n, -1)
    return jnp.einsum("bnk,ek->bne", xp, conv_weight.reshape(E, -1)) + conv_bias


if __name__ == "__main__":
    key = jax.random.PRNGKey(0)

    # --- config 1: small shapes consistent with the module constructor ---
    img_size = (3, 32, 32)
    patch_size = (3, 8, 8)
    in_c = 1
    embed_dim = 32            # padded to 128 lanes inside the wrapper
    batch = 2
    nd, nh, nw = (img_size[i] // patch_size[i] for i in range(3))
    n_patches = nd * nh * nw  # 1*4*4 = 16

    kx, kw, kb = jax.random.split(key, 3)
    conv_weight = jax.random.normal(
        kw, (embed_dim, in_c) + patch_size, dtype=jnp.float32) * 0.02
    conv_bias = jax.random.normal(kb, (embed_dim,), dtype=jnp.float32) * 0.02
    x = jax.random.normal(kx, (batch, in_c) + img_size, dtype=jnp.float32)

    fwd = jax.jit(functools.partial(patch_embed_3d, patch_size=patch_size))
    out = jax.block_until_ready(fwd(x, conv_weight, conv_bias))
    assert out.shape == (batch, n_patches, embed_dim), out.shape
    ref = _reference(x, conv_weight, conv_bias, patch_size)
    assert jnp.allclose(out, ref, atol=1e-4, rtol=1e-4)

    # --- config 2: forces grid > 1 and row padding (M=48, tiles of 32) ---
    batch2 = 3
    x2 = jax.random.normal(jax.random.PRNGKey(1),
                           (batch2, in_c) + img_size, dtype=jnp.float32)
    fwd_small_tile = jax.jit(
        functools.partial(patch_embed_3d, patch_size=patch_size, tm=32))
    out2 = jax.block_until_ready(fwd_small_tile(x2, conv_weight, conv_bias))
    ref2 = _reference(x2, conv_weight, conv_bias, patch_size)
    assert out2.shape == (batch2, n_patches, embed_dim), out2.shape
    assert jnp.allclose(out2, ref2, atol=1e-4, rtol=1e-4)

    # --- config 3: bf16 compute + bf16 output (f32 MXU accum), looser tol ---
    fwd_bf16 = jax.jit(functools.partial(
        patch_embed_3d, patch_size=patch_size, compute_dtype=jnp.bfloat16))
    out3 = jax.block_until_ready(fwd_bf16(x, conv_weight, conv_bias))
    assert out3.shape == (batch, n_patches, embed_dim), out3.shape
    assert out3.dtype == jnp.bfloat16, out3.dtype
    assert jnp.allclose(out3.astype(jnp.float32), ref, atol=3e-2, rtol=3e-2)

    print("KERNEL_OK")
</pallas_src>

<mosaic_0001>
module attributes {stable_mosaic.version = 11 : i64} {
  func.func @_patch_embed_kernel(%arg0: i32, %arg1: i32, %arg2: memref<16x192xf32, #tpu.memory_space<vmem>>, %arg3: memref<192x128xf32, #tpu.memory_space<vmem>>, %arg4: memref<1x128xf32, #tpu.memory_space<vmem>>, %arg5: memref<16x128xf32, #tpu.memory_space<vmem>>) attributes {dimension_semantics = [#tpu.dimension_semantics<parallel>, #tpu.dimension_semantics<parallel>], iteration_bounds = array<i64: 1, 2>, scalar_prefetch = 0 : i64, scratch_operands = 0 : i64, tpu.core_type = #tpu.core_type<tc>, window_params = [{transform_indices = @transform_0, window_bounds = array<i64: 16, 192>}, {pipeline_mode = #tpu.pipeline_mode<synchronous>, transform_indices = @transform_1, window_bounds = array<i64: 192, 128>}, {pipeline_mode = #tpu.pipeline_mode<synchronous>, transform_indices = @transform_2, window_bounds = array<i64: 1, 128>}, {transform_indices = @transform_3, window_bounds = array<i64: 16, 128>}]} {
    %c0 = arith.constant 0 : index
    %c0_0 = arith.constant 0 : index
    %0 = vector.load %arg2[%c0, %c0_0] : memref<16x192xf32, #tpu.memory_space<vmem>>, vector<16x192xf32>
    %c0_1 = arith.constant 0 : index
    %c0_2 = arith.constant 0 : index
    %1 = vector.load %arg3[%c0_1, %c0_2] : memref<192x128xf32, #tpu.memory_space<vmem>>, vector<192x128xf32>
    %cst = arith.constant dense<0.000000e+00> : vector<16x128xf32>
    %2 = tpu.matmul %0, %1, %cst {dimension_numbers = #tpu.dot_dimension_numbers<[1], [0], [0], [1], [0, 0, 1, 1], [], []>} : vector<16x192xf32>, vector<192x128xf32>, vector<16x128xf32> -> vector<16x128xf32>
    %c0_3 = arith.constant 0 : index
    %c0_4 = arith.constant 0 : index
    %3 = vector.load %arg4[%c0_3, %c0_4] : memref<1x128xf32, #tpu.memory_space<vmem>>, vector<1x128xf32>
    %4 = vector.broadcast %3 : vector<1x128xf32> to vector<16x128xf32>
    %5 = arith.addf %2, %4 : vector<16x128xf32>
    %c0_5 = arith.constant 0 : index
    %c0_6 = arith.constant 0 : index
    %6 = vector.load %arg5[%c0_5, %c0_6] : memref<16x128xf32, #tpu.memory_space<vmem>>, vector<16x128xf32>
    tpu.vector_store %arg5[%c0_5, %c0_6], %5 {strides = array<i32>} : memref<16x128xf32, #tpu.memory_space<vmem>>, vector<16x128xf32>,
    return
  }
  func.func @transform_0(%arg0: i32, %arg1: i32) -> (i32, i32) {
    %c0_i32 = arith.constant 0 : i32
    %c0_i32_0 = arith.constant 0 : i32
    return %arg1, %c0_i32 : i32, i32
  }
  func.func @transform_1(%arg0: i32, %arg1: i32) -> (i32, i32) {
    %c0_i32 = arith.constant 0 : i32
    %c0_i32_0 = arith.constant 0 : i32
    return %c0_i32, %arg0 : i32, i32
  }
  func.func @transform_2(%arg0: i32, %arg1: i32) -> (i32, i32) {
    %c0_i32 = arith.constant 0 : i32
    %c0_i32_0 = arith.constant 0 : i32
    return %c0_i32, %arg0 : i32, i32
  }
  func.func @transform_3(%arg0: i32, %arg1: i32) -> (i32, i32) {
    %c0_i32 = arith.constant 0 : i32
    return %arg1, %arg0 : i32, i32
  }
}

</mosaic_0001>

<llo_original>
// kernel: patch_embed_3d.1
$region0: #{patch_embed_3d.1}
  #allocation0 [shape = 'u32[]', space=smem, size = 0x4, offset = 0x4, fixed_abs, tag = 'smem constant byte address 0x4 - core index']
  #allocation1 [shape = 'u32[144,128]{1,0:T(1,128)}', space=vmem, size = 0x12000, scoped, tag = 'internal scratch']
  %s0 = inlined_call_operand.vmem [shape: f32[32,192], index: 0, kind: input, shape index: {}]
  %s1 = inlined_call_operand.vmem [shape: f32[192,128], index: 1, kind: input, shape index: {}]
  %s2 = inlined_call_operand.vmem [shape: f32[1,128], index: 2, kind: input, shape index: {}]
  %s3 = inlined_call_operand.hbm [shape: f32[32,128], index: 3, kind: output, shape index: {}]
  %s4 = sld [smem:[#allocation0]]
  $region45: #{patch_embed_3d.1} parent=0
    _
  %s6 = ssub.s32 1, %s4
  %s7 = scalar_select 0, %s6, %s4
  $region1: #{patch_embed_3d.1} parent=0
    #allocation2 [shape = 'u8[16384]{0}', space=vmem, size = 0x4000, scoped, tag = 'output window, operand 0']
    #allocation3 [shape = 's32[2]{0}', space=sflag, size = 0x8, scoped, tag = 'scoped memory for patch_embed_3d.1']
    %8 = vsyncpa [#allocation3], 0
    %s9 = scalar_lea.sflag [#allocation3], 1
    %10 = vsyncpa %s9, 0
    loop: start=0, step=1, limit=4
    $region2: #{patch_embed_3d.1} parent=1 // loop_pre_header
      _
    $region3: #{patch_embed_3d.1} parent=1 // loop_header
      %s12 = sphi 0, %s16
      %p13 = scmp.ge.s32.totalorder %s12, 4
      %s19 = sphi 0, %s31
      %s20 = sphi 0, %s27
      %s21 = sphi 0, %s19
      %s22 = sphi 0, %s20
      %s23 = sphi 0, %s21
      %s24 = sphi 0, %s22
      %s34 = sphi 0, %s36
      %s37 = sphi 0, %s34
      %s38 = sphi 0, %s37
      %s54 = sphi 0, %s38
      %s60 = sphi 0, %s62
      %s63 = sphi 0, %s60
      %s64 = sphi 0, %s63
      %s80 = sphi 0, %s64
      %s86 = sphi 0, %s88
      %s89 = sphi 0, %s86
      %s90 = sphi 0, %s89
      %s106 = sphi 0, %s90
      %s114 = sphi 0, %s116
      %s117 = sphi 0, %s114
      %s118 = sphi 0, %s117
      %s134 = sphi 0, %s118
    $region4: #{patch_embed_3d.1} parent=1 // loop_header_branch
      %15 = sbr.rel (%p13) target = $region8
    $region5: #{patch_embed_3d.1} parent=1 // loop_body
      %s17 = ssub.s32 %s12, 1
      %s18 = ssub.s32 %s12, 2
      %s25 = sadd.s32 1, %s20
      %p26 = scmp.ge.s32.totalorder %s25, 2
      %s27 = scalar_select %p26, 0, %s25
      %s28 = sadd.s32 1, %s19
      %s29 = scalar_select %p26, %s28, %s19
      %p30 = scmp.ge.s32.totalorder %s29, 1
      %s31 = scalar_select %p30, 0, %s29
      %s32 = ssub.s32 %s20, %s27
      %p33 = scmp.eq.s32.totalorder %s32, 0
      %s35 = sadd.s32 %s34, 1
      %s36 = scalar_select %p33, %s34, %s35
      %p39 = pneg %p33
      %p40 = scmp.eq.s32.totalorder %s12, 1
      %p41 = por %p39, %p40
      %p42 = scmp.ne.s32.totalorder %s34, %s37
      %p43 = scmp.eq.s32.totalorder %s12, 0
      %p44 = por %p42, %p43
      %p45 = scmp.ne.s32.totalorder %s34, %s37
      %p46 = scmp.eq.s32.totalorder %s17, 1
      %p47 = por %p45, %p46
      %p48 = scmp.ne.s32.totalorder %s37, %s38
      %p49 = scmp.eq.s32.totalorder %s17, 0
      %p50 = por %p48, %p49
      %p51 = scmp.ne.s32.totalorder %s37, %s38
      %p52 = scmp.eq.s32.totalorder %s18, 1
      %p53 = por %p51, %p52
      %p55 = scmp.ne.s32.totalorder %s38, %s54
      %p56 = scmp.eq.s32.totalorder %s18, 0
      %p57 = por %p55, %p56
      %s58 = ssub.s32 %s19, %s31
      %p59 = scmp.eq.s32.totalorder %s58, 0
      %s61 = sadd.s32 %s60, 1
      %s62 = scalar_select %p59, %s60, %s61
      %p65 = pneg %p59
      %p66 = scmp.eq.s32.totalorder %s12, 1
      %p67 = por %p65, %p66
      %p68 = scmp.ne.s32.totalorder %s60, %s63
      %p69 = scmp.eq.s32.totalorder %s12, 0
      %p70 = por %p68, %p69
      %p71 = scmp.ne.s32.totalorder %s60, %s63
      %p72 = scmp.eq.s32.totalorder %s17, 1
      %p73 = por %p71, %p72
      %p74 = scmp.ne.s32.totalorder %s63, %s64
      %p75 = scmp.eq.s32.totalorder %s17, 0
      %p76 = por %p74, %p75
      %p77 = scmp.ne.s32.totalorder %s63, %s64
      %p78 = scmp.eq.s32.totalorder %s18, 1
      %p79 = por %p77, %p78
      %p81 = scmp.ne.s32.totalorder %s64, %s80
      %p82 = scmp.eq.s32.totalorder %s18, 0
      %p83 = por %p81, %p82
      %s84 = ssub.s32 %s19, %s31
      %p85 = scmp.eq.s32.totalorder %s84, 0
      %s87 = sadd.s32 %s86, 1
      %s88 = scalar_select %p85, %s86, %s87
      %p91 = pneg %p85
      %p92 = scmp.eq.s32.totalorder %s12, 1
      %p93 = por %p91, %p92
      %p94 = scmp.ne.s32.totalorder %s86, %s89
      %p95 = scmp.eq.s32.totalorder %s12, 0
      %p96 = por %p94, %p95
      %p97 = scmp.ne.s32.totalorder %s86, %s89
      %p98 = scmp.eq.s32.totalorder %s17, 1
      %p99 = por %p97, %p98
      %p100 = scmp.ne.s32.totalorder %s89, %s90
      %p101 = scmp.eq.s32.totalorder %s17, 0
      %p102 = por %p100, %p101
      %p103 = scmp.ne.s32.totalorder %s89, %s90
      %p104 = scmp.eq.s32.totalorder %s18, 1
      %p105 = por %p103, %p104
      %p107 = scmp.ne.s32.totalorder %s90, %s106
      %p108 = scmp.eq.s32.totalorder %s18, 0
      %p109 = por %p107, %p108
      %s110 = ssub.s32 %s20, %s27
      %s111 = ssub.s32 %s19, %s31
      %s112 = sor.u32 %s110, %s111
      %p113 = scmp.eq.s32.totalorder %s112, 0
      %s115 = sadd.s32 %s114, 1
      %s116 = scalar_select %p113, %s114, %s115
      %p119 = pneg %p113
      %p120 = scmp.eq.s32.totalorder %s12, 1
      %p121 = por %p119, %p120
      %p122 = scmp.ne.s32.totalorder %s114, %s117
      %p123 = scmp.eq.s32.totalorder %s12, 0
      %p124 = por %p122, %p123
      %p125 = scmp.ne.s32.totalorder %s114, %s117
      %p126 = scmp.eq.s32.totalorder %s17, 1
      %p127 = por %p125, %p126
      %p128 = scmp.ne.s32.totalorder %s117, %s118
      %p129 = scmp.eq.s32.totalorder %s17, 0
      %p130 = por %p128, %p129
      %p131 = scmp.ne.s32.totalorder %s117, %s118
      %p132 = scmp.eq.s32.totalorder %s18, 1
      %p133 = por %p131, %p132
      %p135 = scmp.ne.s32.totalorder %s118, %s134
      %p136 = scmp.eq.s32.totalorder %s18, 0
      %p137 = por %p135, %p136
      %p138 = scmp.le.s32.totalorder 1, %s12
      %p139 = scmp.lt.s32.totalorder %s12, 3
      %p140 = pnand %p138, %p139
      %p141 = pneg %p140
      // Predicated region
      $region9: #{patch_embed_3d.1} parent=5 // pred_check
        _
      $region10: #{patch_embed_3d.1} parent=5 // pred_check_branch
        %143 = sbr.rel (%p140) target = $region12
      $region11: #{patch_embed_3d.1} parent=5 // pred_region
        %s144 = ssub.s32 %s12, 1
        // Predicated region
        $region13: #{patch_embed_3d.1} parent=11 // pred_check
          %p145 = pneg %p76
        $region14: #{patch_embed_3d.1} parent=11 // pred_check_branch
          %147 = sbr.rel (%p145) target = $region16
        $region15: #{patch_embed_3d.1} parent=11 // pred_region
          %p148 = scmp.lt.s32.totalorder %s21, 0
          %s149 = scalar_select %p148, %s21, 0
          %s150 = smul.addr %s149, 8
          %s151 = scalar_lea.vmem %s1, %s150
        $region16: #{patch_embed_3d.1} parent=11 // pred_fallthru
          _
        // Predicated region
        $region17: #{patch_embed_3d.1} parent=11 // pred_check
          %p152 = pneg %p102
        $region18: #{patch_embed_3d.1} parent=11 // pred_check_branch
          %154 = sbr.rel (%p152) target = $region20
        $region19: #{patch_embed_3d.1} parent=11 // pred_region
          %p155 = scmp.lt.s32.totalorder %s21, 0
          %s156 = scalar_select %p155, %s21, 0
          %s157 = scalar_lea.vmem %s2, %s156
        $region20: #{patch_embed_3d.1} parent=11 // pred_fallthru
          _
      $region12: #{patch_embed_3d.1} parent=5 // pred_fallthru
        _
      %p158 = scmp.lt.s32.totalorder %s12, 2
      // Predicated region
      $region21: #{patch_embed_3d.1} parent=5 // pred_check
        %p159 = pneg %p158
      $region22: #{patch_embed_3d.1} parent=5 // pred_check_branch
        %161 = sbr.rel (%p159) target = $region24
      $region23: #{patch_embed_3d.1} parent=5 // pred_region
        // Predicated region
        $region25: #{patch_embed_3d.1} parent=23 // pred_check
          %p162 = pneg %p44
        $region26: #{patch_embed_3d.1} parent=23 // pred_check_branch
          %164 = sbr.rel (%p162) target = $region28
        $region27: #{patch_embed_3d.1} parent=23 // pred_region
          %s165 = smul.u32 2, %s20
          %p166 = scmp.lt.s32.totalorder %s165, 3
          %s167 = scalar_select %p166, %s165, 3
          %s168 = smul.addr %s167, 2
          %s169 = smul.addr %s168, 8
          %s170 = scalar_lea.vmem %s0, %s169
          %s171 = smul.u32 2, %s20
        $region28: #{patch_embed_3d.1} parent=23 // pred_fallthru
          _
      $region24: #{patch_embed_3d.1} parent=5 // pred_fallthru
        _
      %p172 = scmp.le.s32.totalorder 1, %s12
      %p173 = scmp.lt.s32.totalorder %s12, 3
      %p174 = pnand %p172, %p173
      %p175 = pneg %p174
      // Predicated region
      $region29: #{patch_embed_3d.1} parent=5 // pred_check
        _
      $region30: #{patch_embed_3d.1} parent=5 // pred_check_branch
        %177 = sbr.rel (%p174) target = $region32
      $region31: #{patch_embed_3d.1} parent=5 // pred_region
        %s178 = ssub.s32 %s12, 1
        %s179 = smul.u32 2, %s22
        %p180 = scmp.lt.s32.totalorder %s179, 3
        %s181 = scalar_select %p180, %s179, 3
        %s182 = smul.addr %s181, 2
        %s183 = smul.addr %s182, 8
        %s184 = scalar_lea.vmem %s0, %s183
        %p185 = pneg %p50
        %p186 = pneg %p47
        %p187 = scmp.lt.s32.totalorder %s21, 0
        %s188 = scalar_select %p187, %s21, 0
        %s189 = smul.addr %s188, 8
        %s190 = scalar_lea.vmem %s1, %s189
        %p191 = pneg %p76
        %p192 = pneg %p73
        %p193 = scmp.lt.s32.totalorder %s21, 0
        %s194 = scalar_select %p193, %s21, 0
        %s195 = scalar_lea.vmem %s2, %s194
        %p196 = pneg %p102
        %p197 = pneg %p99
        %p198 = pneg %p130
        %p199 = pneg %p127
        %s200 = sand.u32 %s117, 1
        %s201 = scalar_lea.sflag [#allocation3], %s200
        %s202 = sand.u32 %s117, 1
        %s203 = smul.addr %s202, 16
        %s204 = scalar_lea.vmem [#allocation2], %s203
        %s205 = smul.u32 2, %s22
        %p206 = scmp.lt.s32.totalorder %s205, 3
        %s207 = scalar_select %p206, %s205, 3
        %s208 = smul.addr %s207, 2
        %s209 = smul.addr %s208, 8
        %s210 = scalar_lea.vmem %s0, %s209
        %s211 = smul.u32 2, %s22
        %p212 = scmp.lt.s32.totalorder %s21, 0
        %s213 = scalar_select %p212, %s21, 0
        %s214 = smul.addr %s213, 8
        %s215 = scalar_lea.vmem %s1, %s214
        %p216 = scmp.lt.s32.totalorder %s21, 0
        %s217 = scalar_select %p216, %s21, 0
        %s218 = scalar_lea.vmem %s2, %s217
        %s219 = smul.u32 2, %s22
        %v220 = vld [vmem:[%s210] sm:$0xff]
        %v221 = vld [vmem:[%s210 + $0x8] sm:$0xff]
        %v222 = vld [vmem:[%s210 + $0x10] sm:$0xff]
        %v223 = vld [vmem:[%s210 + $0x18] sm:$0xff]
        %v224 = vld [vmem:[%s215] sm:$0xff]
        %v225 = vld [vmem:[%s215 + $0x8] sm:$0xff]
        %v226 = vld [vmem:[%s215 + $0x10] sm:$0xff]
        %v227 = vld [vmem:[%s215 + $0x18] sm:$0xff]
        %v228 = vld [vmem:[%s215 + $0x20] sm:$0xff]
        %v229 = vld [vmem:[%s215 + $0x28] sm:$0xff]
        %v230 = vld [vmem:[%s215 + $0x30] sm:$0xff]
        %v231 = vld [vmem:[%s215 + $0x38] sm:$0xff]
        %v232 = vld [vmem:[%s215 + $0x40] sm:$0xff]
        %v233 = vld [vmem:[%s215 + $0x48] sm:$0xff]
        %v234 = vld [vmem:[%s215 + $0x50] sm:$0xff]
        %v235 = vld [vmem:[%s215 + $0x58] sm:$0xff]
        %v236 = vld [vmem:[%s215 + $0x60] sm:$0xff]
        %v237 = vld [vmem:[%s215 + $0x68] sm:$0xff]
        %v238 = vld [vmem:[%s215 + $0x70] sm:$0xff]
        %v239 = vld [vmem:[%s215 + $0x78] sm:$0xff]
        %v240 = vld [vmem:[%s215 + $0x80] sm:$0xff]
        %v241 = vld [vmem:[%s215 + $0x88] sm:$0xff]
        %v242 = vld [vmem:[%s215 + $0x90] sm:$0xff]
        %v243 = vld [vmem:[%s215 + $0x98] sm:$0xff]
        %v244 = vld [vmem:[%s215 + $0xa0] sm:$0xff]
        %v245 = vld [vmem:[%s215 + $0xa8] sm:$0xff]
        %v246 = vld [vmem:[%s215 + $0xb0] sm:$0xff]
        %v247 = vld [vmem:[%s215 + $0xb8] sm:$0xff]
        %v248 = vld [vmem:[%s218] sm:$0x1]
        %v250 = vlaneseq
        %v251 = vshrl.u32 %v250, 7
        %v252 = vsub.s32 0, %v251
        %v253 = vrot.slane %v248, %v252
        %vm255 = vcmask 523264
        %v257 = vsel %vm255, %v221, 0
        %v260 = vsel %vm255, %v223, 0
        %262 = vmatprep.subr.mxu0 0.0
        %263 = vmatpush1.msra.mxu0 %v224
        %264 = vmatprep.subr.mxu0 0.0
        %265 = vmatpush1.msra.mxu0 %v225
        %266 = vmatprep.subr.mxu0 0.0
        %267 = vmatpush1.msra.mxu0 %v226
        %268 = vmatprep.subr.mxu0 0.0
        %269 = vmatpush1.msra.mxu0 %v227
        %270 = vmatprep.subr.mxu0 0.0
        %271 = vmatpush1.msra.mxu0 %v228
        %272 = vmatprep.subr.mxu0 0.0
        %273 = vmatpush1.msra.mxu0 %v229
        %274 = vmatprep.subr.mxu0 0.0
        %275 = vmatpush1.msra.mxu0 %v230
        %276 = vmatprep.subr.mxu0 0.0
        %277 = vmatpush1.msra.mxu0 %v231
        %278 = vmatprep.subr.mxu0 0.0
        %279 = vmatpush1.msra.mxu0 %v232
        %280 = vmatprep.subr.mxu0 0.0
        %281 = vmatpush1.msra.mxu0 %v233
        %282 = vmatprep.subr.mxu0 0.0
        %283 = vmatpush1.msra.mxu0 %v234
        %284 = vmatprep.subr.mxu0 0.0
        %285 = vmatpush1.msra.mxu0 %v235
        %286 = vmatprep.subr.mxu0 0.0
        %287 = vmatpush1.msra.mxu0 %v236
        %288 = vmatprep.subr.mxu0 0.0
        %289 = vmatpush1.msra.mxu0 %v237
        %290 = vmatprep.subr.mxu0 0.0
        %291 = vmatpush1.msra.mxu0 %v238
        %292 = vmatprep.subr.mxu0 0.0
        %293 = vmatpush1.msra.mxu0 %v239
        %294 = vmatprep.subr.mxu0 0.0
        %295 = vmatpush1.msra.mxu0 %v240
        %296 = vmatprep.subr.mxu0 0.0
        %297 = vmatpush1.msra.mxu0 %v241
        %298 = vmatprep.subr.mxu0 0.0
        %299 = vmatpush1.msra.mxu0 %v242
        %300 = vmatprep.subr.mxu0 0.0
        %301 = vmatpush1.msra.mxu0 %v243
        %302 = vmatprep.subr.mxu0 0.0
        %303 = vmatpush1.msra.mxu0 %v244
        %304 = vmatprep.subr.mxu0 0.0
        %305 = vmatpush1.msra.mxu0 %v245
        %306 = vmatprep.subr.mxu0 0.0
        %307 = vmatpush1.msra.mxu0 %v246
        %308 = vmatprep.subr.mxu0 0.0
        %309 = vmatpush1.msra.mxu0 %v247
        %310 = vmatprep.subr.mxu0 0.0
        %311 = vmatpush1.msra.mxu0 0.0
        %312 = vmatprep.subr.mxu0 0.0
        %313 = vmatpush1.msra.mxu0 0.0
        %314 = vmatprep.subr.mxu0 0.0
        %315 = vmatpush1.msra.mxu0 0.0
        %316 = vmatprep.subr.mxu0 0.0
        %317 = vmatpush1.msra.mxu0 0.0
        %318 = vmatprep.subr.mxu0 0.0
        %319 = vmatpush1.msra.mxu0 0.0
        %320 = vmatprep.subr.mxu0 0.0
        %321 = vmatpush1.msra.mxu0 0.0
        %322 = vmatprep.subr.mxu0 0.0
        %323 = vmatpush1.msra.mxu0 0.0
        %324 = vmatprep.subr.mxu0 0.0
        %325 = vmatpush1.msra.mxu0 0.0
        %326 = vmatprep.mubr.f32.mxu0 %v257
        %327 = vmatmul.mubr.f32.gmra.mrb[0].mxu0 %v220
        %v328 = vpop.f32.mrb[0].mxu0
        %v329 = vadd.f32 %v253, %v328
        %v330 = vpop.f32.mrb[0].mxu0
        %331 = vmatprep.mubr.f32.mxu0 %v260
        %332 = vmatmul.mubr.f32.gmra.mrb[0].mxu0 %v222
        %v333 = vpop.f32.mrb[0].mxu0
        %v334 = vadd.f32 %v253, %v333
        %v335 = vpop.f32.mrb[0].mxu0
        %336 = vdwg.mxu0
        %337 = vst [vmem:[%s204] sm:$0xff] %v329
        %338 = vst [vmem:[%s204 + $0x8] sm:$0xff] %v334
        %s339 = sand.u32 %s117, 1
        %s340 = scalar_lea.sflag [#allocation3], %s339
        %s341 = sand.u32 %s117, 1
        %s342 = smul.addr %s341, 16
        %s343 = scalar_lea.vmem [#allocation2], %s342
        // Predicated region
        $region33: #{patch_embed_3d.1} parent=31 // pred_check
          %p344 = pneg %p127
        $region34: #{patch_embed_3d.1} parent=31 // pred_check_branch
          %346 = sbr.rel (%p344) target = $region36
        $region35: #{patch_embed_3d.1} parent=31 // pred_region
          %s347 = smul.u32 2, %s22
          %s349 = ssub.s32 256, 256
          %350 = vsyncadd %s340, %s349
          %s351 = sadd.s32 %s21, %s347
          %s352 = smul.addr %s351, 128
          %s353 = scalar_lea.hbm %s3, %s352
          %s354 = sshll.u32 %s343, 4
          %s355 = int_to_ptr.vmem [resolvable:$true] %s354
          %360 = dma.vmem_to_hbm [thread:$0]  %s355, 256, %s353, %s340, 128, 128, 8
        $region36: #{patch_embed_3d.1} parent=31 // pred_fallthru
          _
      $region32: #{patch_embed_3d.1} parent=5 // pred_fallthru
        _
      %p361 = scmp.le.s32.totalorder 2, %s12
      // Predicated region
      $region37: #{patch_embed_3d.1} parent=5 // pred_check
        %p362 = pneg %p361
      $region38: #{patch_embed_3d.1} parent=5 // pred_check_branch
        %364 = sbr.rel (%p362) target = $region40
      $region39: #{patch_embed_3d.1} parent=5 // pred_region
        %s365 = ssub.s32 %s12, 2
        // Predicated region
        $region41: #{patch_embed_3d.1} parent=39 // pred_check
          %p366 = pneg %p133
        $region42: #{patch_embed_3d.1} parent=39 // pred_check_branch
          %368 = sbr.rel (%p366) target = $region44
        $region43: #{patch_embed_3d.1} parent=39 // pred_region
          %s369 = sand.u32 %s118, 1
          %s370 = scalar_lea.sflag [#allocation3], %s369
          %s371 = sand.u32 %s118, 1
          %s372 = smul.addr %s371, 16
          %s373 = scalar_lea.vmem [#allocation2], %s372
          %374 = dma.done %s370, 256
        $region44: #{patch_embed_3d.1} parent=39 // pred_fallthru
          _
      $region40: #{patch_embed_3d.1} parent=5 // pred_fallthru
        _
    $region6: #{patch_embed_3d.1} parent=1 // loop_footer
      %s16 = sadd.s32 1, %s12
    $region7: #{patch_embed_3d.1} parent=1 // loop_footer_branch
      %11 = sbr.rel target = $region3
    $region8: #{patch_embed_3d.1} parent=1 // loop_exit
      _
    %375 = vsyncpa [#allocation3], 1
    %s376 = scalar_lea.sflag [#allocation3], 1
    %377 = vsyncpa %s376, 1

</llo_original>
